<compile_context>
chip_gen: v7x
topology: tpu7x:2x2x1
jax: 0.10.0
libtpu: 0.0.40
codegen_flags: <defaults>
</compile_context>

<pallas_src>
import functools

import jax
import jax.numpy as jnp
from jax.experimental import pallas as pl
from jax.experimental.pallas import tpu as pltpu

_LANE = 128        # lane width (last dim)
_ROW_ALIGN = 16    # sublane alignment; 16 covers bf16 (16,128) packing and f32
_SINGLE_TILE_MAX = 256  # batches up to this run as one grid step


def _round_up(x: int, m: int) -> int:
    return ((x + m - 1) // m) * m


def mlp_kernel(x_ref, w1_ref, b1_ref, w2_ref, b2_ref, o_ref):
    n_states = x_ref.shape[1]
    x = x_ref[...].astype(jnp.float32)                      # (tm, n_states)

    if n_states <= 8:
        # fc1 on the VPU: K=n_states is tiny, so an MXU matmul would pay full
        # systolic fill latency for <3% K utilization. n_states broadcast FMAs
        # on (tm, hp) vregs are cheaper and keep the MXU free for fc2.
        w1 = w1_ref[...].astype(jnp.float32)                # (n_states, hp)
        h = b1_ref[...]                                     # (1, hp) f32
        for s in range(n_states):                           # static unroll
            h = h + x[:, s:s + 1] * w1[s:s + 1, :]
    else:
        h = jnp.dot(x_ref[...], w1_ref[...],
                    preferred_element_type=jnp.float32) + b1_ref[...]

    h = jnp.maximum(h, 0.0)                                 # ReLU in f32 (VPU)

    # fc2: (tm, hp) @ (hp, ap) on the MXU, f32 accumulation.
    out = jnp.dot(h.astype(w2_ref.dtype), w2_ref[...],
                  preferred_element_type=jnp.float32)
    o_ref[...] = (out + b2_ref[...]).astype(o_ref.dtype)


def prepare_params(w1, b1, w2, b2, compute_dtype=jnp.bfloat16):
    """Pad feature dims to the 128-lane width and cast weights to bf16.

    Call ONCE at init / after each parameter update (hoisted out of the
    per-forward-call path). Zero padding is semantics-preserving: padded hidden
    cols get bias 0 -> relu 0 and meet zero W2 rows; padded action cols are
    sliced off by net_forward.
    """
    n_states, n_hidden = w1.shape
    n_actions = w2.shape[1]
    hp = _round_up(n_hidden, _LANE)
    ap = _round_up(n_actions, _LANE)
    w1p = jnp.pad(w1, ((0, 0), (0, hp - n_hidden))).astype(compute_dtype)
    b1p = jnp.pad(b1.reshape(1, n_hidden),
                  ((0, 0), (0, hp - n_hidden))).astype(jnp.float32)
    w2p = jnp.pad(w2, ((0, hp - n_hidden),
                       (0, ap - n_actions))).astype(compute_dtype)
    b2p = jnp.pad(b2.reshape(1, n_actions),
                  ((0, 0), (0, ap - n_actions))).astype(jnp.float32)
    return w1p, b1p, w2p, b2p


@functools.partial(jax.jit, static_argnames=("n_actions", "tile_m"))
def net_forward(x, w1p, b1p, w2p, b2p, *, n_actions, tile_m: int = 4096):
    """Pallas TPU forward pass of Net: fc1 -> relu -> fc2.

    x:   (batch, n_states) f32 (cast to the weights' compute dtype at the
         pallas_call boundary)
    w1p/b1p/w2p/b2p: outputs of prepare_params (lane-padded, bf16 weights).
    """
    batch, n_states = x.shape
    hp = w1p.shape[1]
    ap = w2p.shape[1]
    tile_m = _round_up(tile_m, _ROW_ALIGN)

    # --- Batch tiling: minimize grid steps, but give v7x's two TensorCores
    # work when the batch is large enough to amortize per-step overhead. ---
    b_aligned = _round_up(batch, _ROW_ALIGN)
    if b_aligned <= _SINGLE_TILE_MAX:
        tm = b_aligned                                   # single grid step
    else:
        n_tiles = _round_up(max(2, pl.cdiv(b_aligned, tile_m)), 2)  # even >= 2
        tm = min(tile_m, _round_up(pl.cdiv(b_aligned, n_tiles), _ROW_ALIGN))
    b_pad = _round_up(batch, tm)
    grid = (b_pad // tm,)

    # Batch pad + bf16 cast (padded rows compute relu(b1)@W2+b2, sliced off).
    xp = jnp.pad(x, ((0, b_pad - batch), (0, 0))).astype(w1p.dtype)

    flops = 2 * b_pad * (n_states * hp + hp * ap)
    bytes_accessed = (xp.size * xp.dtype.itemsize
                      + w1p.size * w1p.dtype.itemsize
                      + b1p.size * b1p.dtype.itemsize
                      + w2p.size * w2p.dtype.itemsize
                      + b2p.size * b2p.dtype.itemsize
                      + b_pad * ap * 4)

    out = pl.pallas_call(
        mlp_kernel,
        out_shape=jax.ShapeDtypeStruct((b_pad, ap), jnp.float32),
        grid=grid,
        in_specs=[
            pl.BlockSpec((tm, n_states), lambda i: (i, 0)),  # x tile over batch
            pl.BlockSpec((n_states, hp), lambda i: (0, 0)),  # W1 pinned in VMEM
            pl.BlockSpec((1, hp), lambda i: (0, 0)),         # b1 pinned
            pl.BlockSpec((hp, ap), lambda i: (0, 0)),        # W2 pinned
            pl.BlockSpec((1, ap), lambda i: (0, 0)),         # b2 pinned
        ],
        out_specs=pl.BlockSpec((tm, ap), lambda i: (i, 0)),
        compiler_params=pltpu.CompilerParams(
            dimension_semantics=("parallel",)),
        cost_estimate=pl.CostEstimate(
            flops=flops, transcendentals=0, bytes_accessed=bytes_accessed),
    )(xp, w1p, b1p, w2p, b2p)

    return out[:batch, :n_actions]


def init_params(key, n_states, n_hidden, n_actions, dtype=jnp.float32):
    """Deterministic init mimicking PyTorch nn.Linear default U(+/- 1/sqrt(fan_in))."""
    k1, k2, k3, k4 = jax.random.split(key, 4)
    bound1 = 1.0 / jnp.sqrt(jnp.array(n_states, dtype))
    bound2 = 1.0 / jnp.sqrt(jnp.array(n_hidden, dtype))
    w1 = jax.random.uniform(k1, (n_states, n_hidden), dtype, -bound1, bound1)
    b1 = jax.random.uniform(k2, (1, n_hidden), dtype, -bound1, bound1)
    w2 = jax.random.uniform(k3, (n_hidden, n_actions), dtype, -bound2, bound2)
    b2 = jax.random.uniform(k4, (1, n_actions), dtype, -bound2, bound2)
    return w1, b1, w2, b2


if __name__ == "__main__":
    # CartPole-v0: n_states=4, n_actions=2; module uses n_hidden=64.
    n_states, n_hidden, n_actions = 4, 64, 2

    key = jax.random.PRNGKey(0)
    kx, kp, kx2 = jax.random.split(key, 3)
    w1, b1, w2, b2 = init_params(kp, n_states, n_hidden, n_actions)

    # Pad + cast params ONCE (hoisted out of the per-call path).
    params = prepare_params(w1, b1, w2, b2)

    # Reference matching the kernel's bf16 rounding points (f32 accumulate).
    def ref_fwd_bf16(x):
        xb = x.astype(jnp.bfloat16).astype(jnp.float32)
        w1b = w1.astype(jnp.bfloat16).astype(jnp.float32)
        w2b = w2.astype(jnp.bfloat16).astype(jnp.float32)
        h = jnp.maximum(xb @ w1b + b1, 0.0)
        hb = h.astype(jnp.bfloat16).astype(jnp.float32)
        return hb @ w2b + b2

    # Pure-f32 reference (exact PyTorch semantics) for a loose sanity check.
    def ref_fwd_f32(x):
        return jnp.maximum(x @ w1 + b1, 0.0) @ w2 + b2

    # Small (spec-sized) check: batch=2 -> single grid step.
    x = jax.random.normal(kx, (2, n_states), jnp.float32)
    out = net_forward(x, *params, n_actions=n_actions)
    jax.block_until_ready(out)
    assert out.shape == (2, n_actions)
    assert jnp.allclose(out, ref_fwd_bf16(x), atol=5e-3, rtol=5e-3)
    assert jnp.allclose(out, ref_fwd_f32(x), atol=0.15, rtol=0.05)

    # Larger batch exercising the multi-tile (2-step, megacore-shardable) path.
    x_big = jax.random.normal(kx2, (300, n_states), jnp.float32)
    out_big = net_forward(x_big, *params, n_actions=n_actions)
    jax.block_until_ready(out_big)
    assert out_big.shape == (300, n_actions)
    assert jnp.allclose(out_big, ref_fwd_bf16(x_big), atol=5e-3, rtol=5e-3)
    assert jnp.allclose(out_big, ref_fwd_f32(x_big), atol=0.15, rtol=0.05)

    print("KERNEL_OK")
</pallas_src>

<mosaic_0001>
module attributes {stable_mosaic.version = 11 : i64} {
  func.func @mlp_kernel(%arg0: i32, %arg1: memref<16x4xbf16, #tpu.memory_space<vmem>>, %arg2: memref<4x128xbf16, #tpu.memory_space<vmem>>, %arg3: memref<1x128xf32, #tpu.memory_space<vmem>>, %arg4: memref<128x128xbf16, #tpu.memory_space<vmem>>, %arg5: memref<1x128xf32, #tpu.memory_space<vmem>>, %arg6: memref<16x128xf32, #tpu.memory_space<vmem>>) attributes {dimension_semantics = [#tpu.dimension_semantics<parallel>], iteration_bounds = array<i64: 1>, scalar_prefetch = 0 : i64, scratch_operands = 0 : i64, tpu.core_type = #tpu.core_type<tc>, window_params = [{transform_indices = @transform_0, window_bounds = array<i64: 16, 4>}, {pipeline_mode = #tpu.pipeline_mode<synchronous>, transform_indices = @transform_1, window_bounds = array<i64: 4, 128>}, {pipeline_mode = #tpu.pipeline_mode<synchronous>, transform_indices = @transform_2, window_bounds = array<i64: 1, 128>}, {pipeline_mode = #tpu.pipeline_mode<synchronous>, transform_indices = @transform_3, window_bounds = array<i64: 128, 128>}, {pipeline_mode = #tpu.pipeline_mode<synchronous>, transform_indices = @transform_4, window_bounds = array<i64: 1, 128>}, {transform_indices = @transform_5, window_bounds = array<i64: 16, 128>}]} {
    %c0 = arith.constant 0 : index
    %c0_0 = arith.constant 0 : index
    %0 = vector.load %arg1[%c0, %c0_0] : memref<16x4xbf16, #tpu.memory_space<vmem>>, vector<16x4xbf16>
    %1 = arith.extf %0 : vector<16x4xbf16> to vector<16x4xf32>
    %c0_1 = arith.constant 0 : index
    %c0_2 = arith.constant 0 : index
    %2 = vector.load %arg2[%c0_1, %c0_2] : memref<4x128xbf16, #tpu.memory_space<vmem>>, vector<4x128xbf16>
    %3 = arith.extf %2 : vector<4x128xbf16> to vector<4x128xf32>
    %c0_3 = arith.constant 0 : index
    %c0_4 = arith.constant 0 : index
    %4 = vector.load %arg3[%c0_3, %c0_4] : memref<1x128xf32, #tpu.memory_space<vmem>>, vector<1x128xf32>
    %5 = vector.extract_strided_slice %1 {offsets = [0, 0], sizes = [16, 1], strides = [1, 1]} : vector<16x4xf32> to vector<16x1xf32>
    %6 = vector.extract_strided_slice %3 {offsets = [0, 0], sizes = [1, 128], strides = [1, 1]} : vector<4x128xf32> to vector<1x128xf32>
    %7 = vector.broadcast %5 : vector<16x1xf32> to vector<16x128xf32>
    %8 = vector.broadcast %6 : vector<1x128xf32> to vector<16x128xf32>
    %9 = arith.mulf %7, %8 : vector<16x128xf32>
    %10 = vector.broadcast %4 : vector<1x128xf32> to vector<16x128xf32>
    %11 = arith.addf %10, %9 : vector<16x128xf32>
    %12 = vector.extract_strided_slice %1 {offsets = [0, 1], sizes = [16, 1], strides = [1, 1]} : vector<16x4xf32> to vector<16x1xf32>
    %13 = vector.extract_strided_slice %3 {offsets = [1, 0], sizes = [1, 128], strides = [1, 1]} : vector<4x128xf32> to vector<1x128xf32>
    %14 = vector.broadcast %12 : vector<16x1xf32> to vector<16x128xf32>
    %15 = vector.broadcast %13 : vector<1x128xf32> to vector<16x128xf32>
    %16 = arith.mulf %14, %15 : vector<16x128xf32>
    %17 = arith.addf %11, %16 : vector<16x128xf32>
    %18 = vector.extract_strided_slice %1 {offsets = [0, 2], sizes = [16, 1], strides = [1, 1]} : vector<16x4xf32> to vector<16x1xf32>
    %19 = vector.extract_strided_slice %3 {offsets = [2, 0], sizes = [1, 128], strides = [1, 1]} : vector<4x128xf32> to vector<1x128xf32>
    %20 = vector.broadcast %18 : vector<16x1xf32> to vector<16x128xf32>
    %21 = vector.broadcast %19 : vector<1x128xf32> to vector<16x128xf32>
    %22 = arith.mulf %20, %21 : vector<16x128xf32>
    %23 = arith.addf %17, %22 : vector<16x128xf32>
    %24 = vector.extract_strided_slice %1 {offsets = [0, 3], sizes = [16, 1], strides = [1, 1]} : vector<16x4xf32> to vector<16x1xf32>
    %25 = vector.extract_strided_slice %3 {offsets = [3, 0], sizes = [1, 128], strides = [1, 1]} : vector<4x128xf32> to vector<1x128xf32>
    %26 = vector.broadcast %24 : vector<16x1xf32> to vector<16x128xf32>
    %27 = vector.broadcast %25 : vector<1x128xf32> to vector<16x128xf32>
    %28 = arith.mulf %26, %27 : vector<16x128xf32>
    %29 = arith.addf %23, %28 : vector<16x128xf32>
    %cst = arith.constant 0.000000e+00 : f32
    %30 = vector.broadcast %cst : f32 to vector<16x128xf32>
    %31 = arith.maximumf %29, %30 : vector<16x128xf32>
    %32 = arith.truncf %31 : vector<16x128xf32> to vector<16x128xbf16>
    %c0_5 = arith.constant 0 : index
    %c0_6 = arith.constant 0 : index
    %33 = vector.load %arg4[%c0_5, %c0_6] : memref<128x128xbf16, #tpu.memory_space<vmem>>, vector<128x128xbf16>
    %cst_7 = arith.constant dense<0.000000e+00> : vector<16x128xf32>
    %34 = tpu.matmul %32, %33, %cst_7 {dimension_numbers = #tpu.dot_dimension_numbers<[1], [0], [0], [1], [0, 0, 1, 1], [], []>} : vector<16x128xbf16>, vector<128x128xbf16>, vector<16x128xf32> -> vector<16x128xf32>
    %c0_8 = arith.constant 0 : index
    %c0_9 = arith.constant 0 : index
    %35 = vector.load %arg5[%c0_8, %c0_9] : memref<1x128xf32, #tpu.memory_space<vmem>>, vector<1x128xf32>
    %36 = vector.broadcast %35 : vector<1x128xf32> to vector<16x128xf32>
    %37 = arith.addf %34, %36 : vector<16x128xf32>
    %c0_10 = arith.constant 0 : index
    %c0_11 = arith.constant 0 : index
    %38 = vector.load %arg6[%c0_10, %c0_11] : memref<16x128xf32, #tpu.memory_space<vmem>>, vector<16x128xf32>
    tpu.vector_store %arg6[%c0_10, %c0_11], %37 {strides = array<i32>} : memref<16x128xf32, #tpu.memory_space<vmem>>, vector<16x128xf32>,
    return
  }
  func.func @transform_0(%arg0: i32) -> (i32, i32) {
    %c0_i32 = arith.constant 0 : i32
    %c0_i32_0 = arith.constant 0 : i32
    return %arg0, %c0_i32 : i32, i32
  }
  func.func @transform_1(%arg0: i32) -> (i32, i32) {
    %c0_i32 = arith.constant 0 : i32
    %c0_i32_0 = arith.constant 0 : i32
    %c0_i32_1 = arith.constant 0 : i32
    return %c0_i32, %c0_i32_0 : i32, i32
  }
  func.func @transform_2(%arg0: i32) -> (i32, i32) {
    %c0_i32 = arith.constant 0 : i32
    %c0_i32_0 = arith.constant 0 : i32
    %c0_i32_1 = arith.constant 0 : i32
    return %c0_i32, %c0_i32_0 : i32, i32
  }
  func.func @transform_3(%arg0: i32) -> (i32, i32) {
    %c0_i32 = arith.constant 0 : i32
    %c0_i32_0 = arith.constant 0 : i32
    %c0_i32_1 = arith.constant 0 : i32
    return %c0_i32, %c0_i32_0 : i32, i32
  }
  func.func @transform_4(%arg0: i32) -> (i32, i32) {
    %c0_i32 = arith.constant 0 : i32
    %c0_i32_0 = arith.constant 0 : i32
    %c0_i32_1 = arith.constant 0 : i32
    return %c0_i32, %c0_i32_0 : i32, i32
  }
  func.func @transform_5(%arg0: i32) -> (i32, i32) {
    %c0_i32 = arith.constant 0 : i32
    %c0_i32_0 = arith.constant 0 : i32
    return %arg0, %c0_i32 : i32, i32
  }
}

</mosaic_0001>

<llo_original>
// kernel: net_forward.1
$region0: #{net_forward.1}
  #allocation0 [shape = 'u32[]', space=smem, size = 0x4, offset = 0x4, fixed_abs, tag = 'smem constant byte address 0x4 - core index']
  #allocation1 [shape = 'u32[144,128]{1,0:T(1,128)}', space=vmem, size = 0x12000, scoped, tag = 'internal scratch']
  %s0 = inlined_call_operand.vmem [shape: bf16[16,4], index: 0, kind: input, shape index: {}]
  %s1 = inlined_call_operand.vmem [shape: bf16[4,128], index: 1, kind: input, shape index: {}]
  %s2 = inlined_call_operand.vmem [shape: f32[1,128], index: 2, kind: input, shape index: {}]
  %s3 = inlined_call_operand.hbm [shape: bf16[128,128], index: 3, kind: input, shape index: {}]
  %s4 = inlined_call_operand.vmem [shape: f32[1,128], index: 4, kind: input, shape index: {}]
  %s5 = inlined_call_operand.vmem [shape: f32[16,128], index: 5, kind: output, shape index: {}]
  %s6 = sld [smem:[#allocation0]]
  $region34: #{net_forward.1} parent=0
    _
  %s8 = ssub.s32 1, %s6
  %s9 = scalar_select 0, %s8, %s6
  $region1: #{net_forward.1} parent=0
    #allocation2 [shape = 'u8[32768]{0}', space=vmem, size = 0x8000, scoped, tag = 'input window, operand 3, single buffered']
    #allocation3 [shape = 's32[1]{0}', space=sflag, size = 0x4, scoped, tag = 'scoped memory for net_forward.1']
    %10 = vsyncpa [#allocation3], 0
    // Predicated region
    $region2: #{net_forward.1} parent=1 // pred_check
      _
    $region3: #{net_forward.1} parent=1 // pred_check_branch
      %12 = sbr.rel (0) target = $region5
    $region4: #{net_forward.1} parent=1 // pred_region
      _
    $region5: #{net_forward.1} parent=1 // pred_fallthru
      _
    // Predicated region
    $region6: #{net_forward.1} parent=1 // pred_check
      _
    $region7: #{net_forward.1} parent=1 // pred_check_branch
      %14 = sbr.rel (0) target = $region9
    $region8: #{net_forward.1} parent=1 // pred_region
      _
    $region9: #{net_forward.1} parent=1 // pred_fallthru
      _
    // Predicated region
    $region10: #{net_forward.1} parent=1 // pred_check
      _
    $region11: #{net_forward.1} parent=1 // pred_check_branch
      %16 = sbr.rel (0) target = $region13
    $region12: #{net_forward.1} parent=1 // pred_region
      _
    $region13: #{net_forward.1} parent=1 // pred_fallthru
      _
    // Predicated region
    $region14: #{net_forward.1} parent=1 // pred_check
      _
    $region15: #{net_forward.1} parent=1 // pred_check_branch
      %18 = sbr.rel (0) target = $region17
    $region16: #{net_forward.1} parent=1 // pred_region
      %s20 = ssub.s32 1024, 1024
      %21 = vsyncadd [#allocation3], %s20
      %s22 = sshll.u32 [#allocation2], 4
      %s23 = int_to_ptr.vmem [resolvable:$true] %s22
      %28 = dma.hbm_to_vmem [thread:$0]  %s3, 1024, %s23, [#allocation3], 64, 64, 4
    $region17: #{net_forward.1} parent=1 // pred_fallthru
      _
    // Predicated region
    $region18: #{net_forward.1} parent=1 // pred_check
      _
    $region19: #{net_forward.1} parent=1 // pred_check_branch
      %30 = sbr.rel (0) target = $region21
    $region20: #{net_forward.1} parent=1 // pred_region
      _
    $region21: #{net_forward.1} parent=1 // pred_fallthru
      _
    // Predicated region
    $region22: #{net_forward.1} parent=1 // pred_check
      _
    $region23: #{net_forward.1} parent=1 // pred_check_branch
      %32 = sbr.rel (0) target = $region25
    $region24: #{net_forward.1} parent=1 // pred_region
      %33 = dma.done [#allocation3], 1024
    $region25: #{net_forward.1} parent=1 // pred_fallthru
      _
    %v35 = vld [vmem:[%s0] sm:$0xf]
    %v36 = vld [vmem:[%s0 + $0x4] sm:$0xf]
    %v37 = vunpack.c.l.bf16 %v35
    %v38 = vunpack.c.l.bf16 %v36
    %v39 = vld [vmem:[%s1] sm:$0x3]
    %v40 = vunpack.c.l.bf16 %v39
    %v41 = vld [vmem:[%s2] sm:$0x1]
    %43 = vset.pattern.permute.xlu0 0
    %44 = vperm.xlu0 %43, %v37
    %v45 = vpop.permute.xlu0 %44
    %48 = vset.pattern.permute.xlu0 0
    %49 = vperm.xlu0 %48, %v38
    %v50 = vpop.permute.xlu0 %49
    %v52 = vlaneseq
    %v53 = vshrl.u32 %v52, 7
    %v54 = vsub.s32 0, %v53
    %v55 = vrot.slane %v40, %v54
    %v56 = vmul.f32 %v45, %v55
    %v57 = vmul.f32 %v50, %v55
    %v59 = vlaneseq
    %v60 = vshrl.u32 %v59, 7
    %v61 = vsub.s32 0, %v60
    %v62 = vrot.slane %v41, %v61
    %v64 = vadd.f32 %v62, %v56
    %v65 = vadd.f32 %v62, %v57
    %66 = vset.pattern.permute.xlu0 1
    %67 = vperm.xlu0 %66, %v37
    %v68 = vpop.permute.xlu0 %67
    %70 = vset.pattern.permute.xlu0 1
    %71 = vperm.xlu0 %70, %v38
    %v72 = vpop.permute.xlu0 %71
    %v74 = vlaneseq
    %v75 = vshrl.u32 %v74, 7
    %v76 = vsub.s32 1, %v75
    %v77 = vrot.slane %v40, %v76
    %v78 = vmul.f32 %v68, %v77
    %v79 = vmul.f32 %v72, %v77
    %v80 = vadd.f32 %v64, %v78
    %v81 = vadd.f32 %v65, %v79
    %82 = vset.pattern.permute.xlu0 2
    %83 = vperm.xlu0 %82, %v37
    %v84 = vpop.permute.xlu0 %83
    %86 = vset.pattern.permute.xlu0 2
    %87 = vperm.xlu0 %86, %v38
    %v88 = vpop.permute.xlu0 %87
    %v90 = vlaneseq
    %v91 = vshrl.u32 %v90, 7
    %v92 = vsub.s32 2, %v91
    %v93 = vrot.slane %v40, %v92
    %v94 = vmul.f32 %v84, %v93
    %v95 = vmul.f32 %v88, %v93
    %v96 = vadd.f32 %v80, %v94
    %v97 = vadd.f32 %v81, %v95
    %98 = vset.pattern.permute.xlu0 3
    %99 = vperm.xlu0 %98, %v37
    %v100 = vpop.permute.xlu0 %99
    %102 = vset.pattern.permute.xlu0 3
    %103 = vperm.xlu0 %102, %v38
    %v104 = vpop.permute.xlu0 %103
    %v106 = vlaneseq
    %v107 = vshrl.u32 %v106, 7
    %v108 = vsub.s32 3, %v107
    %v109 = vrot.slane %v40, %v108
    %v110 = vmul.f32 %v100, %v109
    %v111 = vmul.f32 %v104, %v109
    %v112 = vadd.f32 %v96, %v110
    %v113 = vadd.f32 %v97, %v111
    %v114 = vmax.f32 %v112, 0.0
    %v115 = vmax.f32 %v113, 0.0
    %v116 = vpack.c.bf16 %v115, %v114
    %v117 = vld [vmem:[#allocation2] sm:$0xf]
    %v118 = vld [vmem:[#allocation2 + $0x4] sm:$0xf]
    %v119 = vld [vmem:[#allocation2 + $0x8] sm:$0xf]
    %v120 = vld [vmem:[#allocation2 + $0xc] sm:$0xf]
    %v121 = vld [vmem:[#allocation2 + $0x10] sm:$0xf]
    %v122 = vld [vmem:[#allocation2 + $0x14] sm:$0xf]
    %v123 = vld [vmem:[#allocation2 + $0x18] sm:$0xf]
    %v124 = vld [vmem:[#allocation2 + $0x1c] sm:$0xf]
    %v125 = vld [vmem:[#allocation2 + $0x20] sm:$0xf]
    %v126 = vld [vmem:[#allocation2 + $0x24] sm:$0xf]
    %v127 = vld [vmem:[#allocation2 + $0x28] sm:$0xf]
    %v128 = vld [vmem:[#allocation2 + $0x2c] sm:$0xf]
    %v129 = vld [vmem:[#allocation2 + $0x30] sm:$0xf]
    %v130 = vld [vmem:[#allocation2 + $0x34] sm:$0xf]
    %v131 = vld [vmem:[#allocation2 + $0x38] sm:$0xf]
    %v132 = vld [vmem:[#allocation2 + $0x3c] sm:$0xf]
    %v133 = vld [vmem:[%s4] sm:$0x1]
    %v135 = vlaneseq
    %v136 = vshrl.u32 %v135, 7
    %v137 = vsub.s32 0, %v136
    %v138 = vrot.slane %v133, %v137
    %v156 = vunpack.c.l.b16 %v117
    %v157 = vunpack.c.l.b16 %v118
    %v158 = vunpack.c.l.b16 %v119
    %v159 = vunpack.c.l.b16 %v120
    %v160 = vunpack.c.l.b16 %v121
    %v161 = vunpack.c.l.b16 %v122
    %v162 = vunpack.c.l.b16 %v123
    %v163 = vunpack.c.l.b16 %v124
    %v164 = vunpack.c.l.b16 %v125
    %v165 = vunpack.c.l.b16 %v126
    %v166 = vunpack.c.l.b16 %v127
    %v167 = vunpack.c.l.b16 %v128
    %v168 = vunpack.c.l.b16 %v129
    %v169 = vunpack.c.l.b16 %v130
    %v170 = vunpack.c.l.b16 %v131
    %v171 = vunpack.c.l.b16 %v132
    %v172 = vpack.c.b16 %v157, %v156
    %v173 = vpack.c.b16 %v159, %v158
    %v174 = vpack.c.b16 %v161, %v160
    %v175 = vpack.c.b16 %v163, %v162
    %v176 = vpack.c.b16 %v165, %v164
    %v177 = vpack.c.b16 %v167, %v166
    %v178 = vpack.c.b16 %v169, %v168
    %v179 = vpack.c.b16 %v171, %v170
    %188 = vmatprep.subr.bf16.mxu0 0
    %189 = vmatpush1.bf16.msra.mxu0 %v172
    %190 = vmatprep.subr.bf16.mxu0 0
    %191 = vmatpush1.bf16.msra.mxu0 %v173
    %192 = vmatprep.subr.bf16.mxu0 0
    %193 = vmatpush1.bf16.msra.mxu0 %v174
    %194 = vmatprep.subr.bf16.mxu0 0
    %195 = vmatpush1.bf16.msra.mxu0 %v175
    %196 = vmatprep.subr.bf16.mxu0 0
    %197 = vmatpush1.bf16.msra.mxu0 %v176
    %198 = vmatprep.subr.bf16.mxu0 0
    %199 = vmatpush1.bf16.msra.mxu0 %v177
    %200 = vmatprep.subr.bf16.mxu0 0
    %201 = vmatpush1.bf16.msra.mxu0 %v178
    %202 = vmatprep.subr.bf16.mxu0 0
    %203 = vmatpush1.bf16.msra.mxu0 %v179
    %204 = vmatprep.subr.bf16.mxu0 0
    %205 = vmatpush1.bf16.msra.mxu0 0
    %206 = vmatprep.subr.bf16.mxu0 0
    %207 = vmatpush1.bf16.msra.mxu0 0
    %208 = vmatprep.subr.bf16.mxu0 0
    %209 = vmatpush1.bf16.msra.mxu0 0
    %210 = vmatprep.subr.bf16.mxu0 0
    %211 = vmatpush1.bf16.msra.mxu0 0
    %212 = vmatprep.subr.bf16.mxu0 0
    %213 = vmatpush1.bf16.msra.mxu0 0
    %214 = vmatprep.subr.bf16.mxu0 0
    %215 = vmatpush1.bf16.msra.mxu0 0
    %216 = vmatprep.subr.bf16.mxu0 0
    %217 = vmatpush1.bf16.msra.mxu0 0
    %218 = vmatprep.subr.bf16.mxu0 0
    %219 = vmatpush1.bf16.msra.mxu0 0
    %220 = vmatprep.mubr.bf16.mxu0 0
    %221 = vmatmul.mubr.bf16.gmra.mrb[0].mxu0 %v116
    %v222 = vpop.f32.mrb[0].mxu0
    %v223 = vadd.f32 %v138, %v222
    %v224 = vpop.f32.mrb[0].mxu0
    %v225 = vpop.f32.mrb[0].mxu0
    %v226 = vadd.f32 %v138, %v225
    %v227 = vpop.f32.mrb[0].mxu0
    %228 = vdwg.mxu0
    %229 = vst [vmem:[%s5] sm:$0xff] %v223
    %230 = vst [vmem:[%s5 + $0x8] sm:$0xff] %v226
    // Predicated region
    $region26: #{net_forward.1} parent=1 // pred_check
      _
    $region27: #{net_forward.1} parent=1 // pred_check_branch
      %232 = sbr.rel (0) target = $region29
    $region28: #{net_forward.1} parent=1 // pred_region
      _
    $region29: #{net_forward.1} parent=1 // pred_fallthru
      _
    // Predicated region
    $region30: #{net_forward.1} parent=1 // pred_check
      _
    $region31: #{net_forward.1} parent=1 // pred_check_branch
      %234 = sbr.rel (0) target = $region33
    $region32: #{net_forward.1} parent=1 // pred_region
      _
    $region33: #{net_forward.1} parent=1 // pred_fallthru
      _
    %235 = vsyncpa [#allocation3], 1

</llo_original>
